<compile_context>
chip_gen: v7x
topology: tpu7x:2x2x1
jax: 0.10.0
libtpu: 0.0.40
codegen_flags: <defaults>
</compile_context>

<pallas_src>
import jax
import jax.numpy as jnp
from jax.experimental import pallas as pl
from jax.experimental.pallas import tpu as pltpu

_LANE = 128
_SUBLANE = 8


def _emd_kernel(x_ref, y_ref, o_ref):
    bins = x_ref.shape[1]
    # Row-wise difference in f32 (inputs may be bf16; everything accumulates f32).
    d = x_ref[...].astype(jnp.float32) - y_ref[...].astype(jnp.float32)   # (Bt, bins)

    # Lower-triangular L[j, i] = (i <= j), rebuilt from 2-D iotas each step
    # (VPU filler; free while the kernel is DMA-bound, and avoids a resident
    # bins^2 VMEM buffer / per-core init hazards).
    row = jax.lax.broadcasted_iota(jnp.int32, (bins, bins), 0)
    col = jax.lax.broadcasted_iota(jnp.int32, (bins, bins), 1)
    ttl = (col <= row).astype(jnp.float32)

    # cdf(x - y)^T = L @ d^T, written as an NT dot_general (contract last dims)
    # so the batch dim stays on lanes.  Exact identity with the reference:
    # cdf_x - cdf_y == (x - y) @ tt and tt^T == L.
    cdf_t = jax.lax.dot_general(
        ttl, d, (((1,), (1,)), ((), ())),
        preferred_element_type=jnp.float32)                               # (bins, Bt)

    # Sublane reduce -> (1, Bt): lane-dense output block, unmasked stores.
    o_ref[0] = jnp.sum(cdf_t * cdf_t, axis=0, keepdims=True)


def _vmem_estimate(rows, bins, itemsize):
    return (4 * rows * bins * itemsize   # x, y: 2 inputs x 2 pipeline buffers
            + 3 * rows * bins * 4        # f32 d / cdf^T / elementwise temps
            + bins * bins * 4            # triangular MXU operand
            + 4 * rows * 4)              # (1, 1, rows) f32 output, 2 buffers


def _choose_block_rows(B, bins, itemsize):
    """Rows per grid step: ~4 MiB of x+y per step, VMEM-capped, >= ~4 steps."""
    target_step_bytes = 4 << 20
    bt = max(_LANE, target_step_bytes // (2 * bins * itemsize))
    bt = (bt // _LANE) * _LANE

    # Keep the whole footprint well inside v7x's 64 MiB physical VMEM.
    while bt > _LANE and _vmem_estimate(bt, bins, itemsize) > (40 << 20):
        bt = max(_LANE, (bt // 2) // _LANE * _LANE)

    # >= ~4 grid steps for large batches so the "parallel" axis can shard
    # across v7x's two TensorCores and stays DMA/compute pipelined.
    if B >= 4 * _LANE:
        quarter = -(-B // 4)
        quarter = -(-quarter // _LANE) * _LANE
        bt = min(bt, max(_LANE, quarter))

    return B if B <= bt else bt


def earth_movers_distance_loss(x, y, *, block_rows=None):
    """x, y: (B, bins) arrays. Returns (B,) float32 per-row EMD-squared loss."""
    assert x.shape == y.shape and x.ndim == 2
    B, bins = x.shape
    itemsize = jnp.dtype(x.dtype).itemsize

    if block_rows is None:
        bt = _choose_block_rows(B, bins, itemsize)
    else:
        bt = B if block_rows >= B else block_rows
        assert bt == B or bt % _SUBLANE == 0, "block_rows must be a multiple of 8"
    nb = -(-B // bt)   # ceil — no jnp.pad: rows are independent, ragged-tail
                       # garbage lands only in output slots sliced off below.

    # Explicit scoped-VMEM limit (v5e default is ~16 MiB; v7x physical 64 MiB).
    vmem_limit = int(min(max(_vmem_estimate(bt, bins, itemsize) + (4 << 20),
                             16 << 20), 48 << 20))

    out = pl.pallas_call(
        _emd_kernel,
        out_shape=jax.ShapeDtypeStruct((nb, 1, bt), jnp.float32),
        grid_spec=pltpu.PrefetchScalarGridSpec(
            num_scalar_prefetch=0,
            grid=(nb,),
            in_specs=[
                pl.BlockSpec((bt, bins), lambda i: (i, 0)),    # x tile
                pl.BlockSpec((bt, bins), lambda i: (i, 0)),    # y tile
            ],
            out_specs=pl.BlockSpec((1, 1, bt), lambda i: (i, 0, 0)),  # lane-dense
        ),
        compiler_params=pltpu.CompilerParams(
            dimension_semantics=("parallel",),   # shards grid across v7x's 2 TCs
            vmem_limit_bytes=vmem_limit,
        ),
    )(x, y)
    return out.reshape(-1)[:B]


def _reference(x, y):
    bins = x.shape[1]
    r = jnp.arange(bins)
    tt = (r[None, :] >= r[:, None]).astype(jnp.float32)
    cdf_x = x.astype(jnp.float32) @ tt
    cdf_y = y.astype(jnp.float32) @ tt
    return jnp.sum(jnp.square(cdf_x - cdf_y), axis=1)


if __name__ == "__main__":
    key = jax.random.PRNGKey(0)
    keys = jax.random.split(key, 6)

    def softmax_pair(k1, k2, B, bins):
        xx = jax.nn.softmax(jax.random.normal(k1, (B, bins), dtype=jnp.float32), axis=-1)
        yy = jax.nn.softmax(jax.random.normal(k2, (B, bins), dtype=jnp.float32), axis=-1)
        return xx, yy

    # Case 1: small batch -> single full (B, bins) block.
    x1, y1 = softmax_pair(keys[0], keys[1], 8, 128)
    out1 = jax.block_until_ready(earth_movers_distance_loss(x1, y1))
    ref1 = _reference(x1, y1)
    assert out1.shape == (8,)
    assert jnp.allclose(out1, ref1, rtol=1e-4, atol=1e-5), (out1, ref1)

    # Case 2: batch not a tile multiple -> ragged multi-step grid, no padding pass.
    x2, y2 = softmax_pair(keys[2], keys[3], 20, 128)
    out2 = jax.block_until_ready(earth_movers_distance_loss(x2, y2, block_rows=8))
    ref2 = _reference(x2, y2)
    assert out2.shape == (20,)
    assert jnp.allclose(out2, ref2, rtol=1e-4, atol=1e-5), (out2, ref2)

    # Case 3: auto tiling path (128-aligned lane-dense tiles, >= 2 grid steps).
    x3, y3 = softmax_pair(keys[4], keys[5], 1024, 128)
    out3 = jax.block_until_ready(earth_movers_distance_loss(x3, y3))
    ref3 = _reference(x3, y3)
    assert out3.shape == (1024,)
    assert jnp.allclose(out3, ref3, rtol=1e-4, atol=1e-5), (out3, ref3)

    print("KERNEL_OK")
</pallas_src>

<mosaic_0001>
module attributes {stable_mosaic.version = 11 : i64} {
  func.func @_emd_kernel(%arg0: i32, %arg1: memref<8x128xf32, #tpu.memory_space<vmem>>, %arg2: memref<8x128xf32, #tpu.memory_space<vmem>>, %arg3: memref<1x1x8xf32, #tpu.memory_space<vmem>>) attributes {dimension_semantics = [#tpu.dimension_semantics<parallel>], iteration_bounds = array<i64: 1>, scalar_prefetch = 0 : i64, scratch_operands = 0 : i64, tpu.core_type = #tpu.core_type<tc>, window_params = [{transform_indices = @transform_0, window_bounds = array<i64: 8, 128>}, {transform_indices = @transform_1, window_bounds = array<i64: 8, 128>}, {transform_indices = @transform_2, window_bounds = array<i64: 1, 1, 8>}]} {
    %c0 = arith.constant 0 : index
    %c0_0 = arith.constant 0 : index
    %0 = vector.load %arg1[%c0, %c0_0] : memref<8x128xf32, #tpu.memory_space<vmem>>, vector<8x128xf32>
    %c0_1 = arith.constant 0 : index
    %c0_2 = arith.constant 0 : index
    %1 = vector.load %arg2[%c0_1, %c0_2] : memref<8x128xf32, #tpu.memory_space<vmem>>, vector<8x128xf32>
    %2 = arith.subf %0, %1 : vector<8x128xf32>
    %3 = tpu.iota {dimensions = array<i32: 0>} : vector<128x128xi32>
    %4 = tpu.iota {dimensions = array<i32: 1>} : vector<128x128xi32>
    %5 = arith.cmpi sle, %4, %3 : vector<128x128xi32>
    %6 = arith.extui %5 : vector<128x128xi1> to vector<128x128xi32>
    %7 = arith.sitofp %6 : vector<128x128xi32> to vector<128x128xf32>
    %cst = arith.constant dense<0.000000e+00> : vector<128x8xf32>
    %8 = tpu.matmul %7, %2, %cst {dimension_numbers = #tpu.dot_dimension_numbers<[1], [1], [0], [0], [0, 0, 1, 0], [], []>} : vector<128x128xf32>, vector<8x128xf32>, vector<128x8xf32> -> vector<128x8xf32>
    %9 = arith.mulf %8, %8 : vector<128x8xf32>
    %cst_3 = arith.constant dense<0.000000e+00> : vector<8xf32>
    %10 = vector.multi_reduction <add>, %9, %cst_3 [0] : vector<128x8xf32> to vector<8xf32>
    %11 = vector.shape_cast %10 : vector<8xf32> to vector<1x8xf32>
    %c0_4 = arith.constant 0 : index
    %c0_5 = arith.constant 0 : index
    %c0_6 = arith.constant 0 : index
    %12 = vector.load %arg3[%c0_4, %c0_5, %c0_6] : memref<1x1x8xf32, #tpu.memory_space<vmem>>, vector<1x1x8xf32>
    %13 = vector.shape_cast %12 : vector<1x1x8xf32> to vector<1x8xf32>
    %14 = vector.shape_cast %11 : vector<1x8xf32> to vector<1x1x8xf32>
    tpu.vector_store %arg3[%c0_4, %c0_5, %c0_6], %14 {strides = array<i32>} : memref<1x1x8xf32, #tpu.memory_space<vmem>>, vector<1x1x8xf32>,
    return
  }
  func.func @transform_0(%arg0: i32) -> (i32, i32) {
    %c0_i32 = arith.constant 0 : i32
    %c0_i32_0 = arith.constant 0 : i32
    return %arg0, %c0_i32 : i32, i32
  }
  func.func @transform_1(%arg0: i32) -> (i32, i32) {
    %c0_i32 = arith.constant 0 : i32
    %c0_i32_0 = arith.constant 0 : i32
    return %arg0, %c0_i32 : i32, i32
  }
  func.func @transform_2(%arg0: i32) -> (i32, i32, i32) {
    %c0_i32 = arith.constant 0 : i32
    %c0_i32_0 = arith.constant 0 : i32
    %c0_i32_1 = arith.constant 0 : i32
    return %arg0, %c0_i32, %c0_i32_0 : i32, i32, i32
  }
}

</mosaic_0001>

<llo_original>
// kernel: tpu_custom_call.1
$region0: #{tpu_custom_call.1}
  #allocation0 [shape = 'u32[]', space=smem, size = 0x4, offset = 0x4, fixed_abs, tag = 'smem constant byte address 0x4 - core index']
  #allocation1 [shape = 'u32[144,128]{1,0:T(1,128)}', space=vmem, size = 0x12000, scoped, tag = 'internal scratch']
  %s0 = inlined_call_operand.hbm [shape: f32[8,128], index: 0, kind: input, shape index: {}]
  %s1 = inlined_call_operand.hbm [shape: f32[8,128], index: 1, kind: input, shape index: {}]
  %s2 = inlined_call_operand.hbm [shape: f32[1,1,8], index: 2, kind: output, shape index: {}]
  %s3 = sld [smem:[#allocation0]]
  $region26: #{tpu_custom_call.1} parent=0
    _
  %s5 = ssub.s32 1, %s3
  %s6 = scalar_select 0, %s5, %s3
  $region1: #{tpu_custom_call.1} parent=0
    #allocation2 [shape = 'u8[4096]{0}', space=vmem, size = 0x1000, scoped, tag = 'input window, operand 0, single buffered']
    #allocation3 [shape = 's32[1]{0}', space=sflag, size = 0x4, scoped, tag = 'scoped memory for tpu_custom_call.1']
    #allocation4 [shape = 's32[1]{0}', space=sflag, size = 0x4, scoped, tag = 'scoped memory for tpu_custom_call.1']
    #allocation5 [shape = 'u8[4096]{0}', space=vmem, size = 0x1000, scoped, tag = 'input window, operand 1, single buffered']
    #allocation6 [shape = 's32[1]{0}', space=sflag, size = 0x4, scoped, tag = 'scoped memory for tpu_custom_call.1']
    #allocation7 [shape = 'u8[512]{0}', space=vmem, size = 0x400, scoped, tag = 'output window, operand 0, single buffered']
    %7 = vsyncpa [#allocation3], 0
    %8 = vsyncpa [#allocation6], 0
    %9 = vsyncpa [#allocation4], 0
    // Predicated region
    $region2: #{tpu_custom_call.1} parent=1 // pred_check
      _
    $region3: #{tpu_custom_call.1} parent=1 // pred_check_branch
      %11 = sbr.rel (0) target = $region5
    $region4: #{tpu_custom_call.1} parent=1 // pred_region
      %s13 = ssub.s32 128, 128
      %14 = vsyncadd [#allocation3], %s13
      %s16 = sshll.u32 [#allocation2], 4
      %s17 = int_to_ptr.vmem [resolvable:$true] %s16
      %19 = dma.hbm_to_vmem [thread:$0]  %s0, 128, %s17, [#allocation3]
    $region5: #{tpu_custom_call.1} parent=1 // pred_fallthru
      _
    // Predicated region
    $region6: #{tpu_custom_call.1} parent=1 // pred_check
      _
    $region7: #{tpu_custom_call.1} parent=1 // pred_check_branch
      %21 = sbr.rel (0) target = $region9
    $region8: #{tpu_custom_call.1} parent=1 // pred_region
      %s23 = ssub.s32 128, 128
      %24 = vsyncadd [#allocation6], %s23
      %s26 = sshll.u32 [#allocation5], 4
      %s27 = int_to_ptr.vmem [resolvable:$true] %s26
      %29 = dma.hbm_to_vmem [thread:$0]  %s1, 128, %s27, [#allocation6]
    $region9: #{tpu_custom_call.1} parent=1 // pred_fallthru
      _
    // Predicated region
    $region10: #{tpu_custom_call.1} parent=1 // pred_check
      _
    $region11: #{tpu_custom_call.1} parent=1 // pred_check_branch
      %31 = sbr.rel (0) target = $region13
    $region12: #{tpu_custom_call.1} parent=1 // pred_region
      %32 = dma.done [#allocation3], 128
    $region13: #{tpu_custom_call.1} parent=1 // pred_fallthru
      _
    // Predicated region
    $region14: #{tpu_custom_call.1} parent=1 // pred_check
      _
    $region15: #{tpu_custom_call.1} parent=1 // pred_check_branch
      %34 = sbr.rel (0) target = $region17
    $region16: #{tpu_custom_call.1} parent=1 // pred_region
      %35 = dma.done [#allocation6], 128
    $region17: #{tpu_custom_call.1} parent=1 // pred_fallthru
      _
    %v36 = vld [vmem:[#allocation2] sm:$0xff]
    %v37 = vld [vmem:[#allocation5] sm:$0xff]
    %v38 = vsub.f32 %v36, %v37
    %v39 = vlaneseq
    %v40 = vshrl.u32 %v39, 7
    %v41 = vadd.s32 %v40, 8
    %v42 = vadd.s32 %v40, 16
    %v43 = vadd.s32 %v40, 24
    %v44 = vadd.s32 %v40, 32
    %v45 = vadd.s32 %v40, 40
    %v46 = vadd.s32 %v40, 48
    %v47 = vadd.s32 %v40, 56
    %v48 = vadd.s32 %v40, 64
    %v49 = vadd.s32 %v40, 72
    %v50 = vadd.s32 %v40, 80
    %v51 = vadd.s32 %v40, 88
    %v52 = vadd.s32 %v40, 96
    %v53 = vadd.s32 %v40, 104
    %v54 = vadd.s32 %v40, 112
    %v55 = vadd.s32 %v40, 120
    %v56 = vlaneseq
    %v57 = vand.u32 %v56, 127
    %vm58 = vcmp.le.s32.totalorder %v57, %v40
    %vm59 = vcmp.le.s32.totalorder %v57, %v41
    %vm60 = vcmp.le.s32.totalorder %v57, %v42
    %vm61 = vcmp.le.s32.totalorder %v57, %v43
    %vm62 = vcmp.le.s32.totalorder %v57, %v44
    %vm63 = vcmp.le.s32.totalorder %v57, %v45
    %vm64 = vcmp.le.s32.totalorder %v57, %v46
    %vm65 = vcmp.le.s32.totalorder %v57, %v47
    %vm66 = vcmp.le.s32.totalorder %v57, %v48
    %vm67 = vcmp.le.s32.totalorder %v57, %v49
    %vm68 = vcmp.le.s32.totalorder %v57, %v50
    %vm69 = vcmp.le.s32.totalorder %v57, %v51
    %vm70 = vcmp.le.s32.totalorder %v57, %v52
    %vm71 = vcmp.le.s32.totalorder %v57, %v53
    %vm72 = vcmp.le.s32.totalorder %v57, %v54
    %vm73 = vcmp.le.s32.totalorder %v57, %v55
    %v74 = vsel %vm58, 1, 0
    %v75 = vsel %vm59, 1, 0
    %v76 = vsel %vm60, 1, 0
    %v77 = vsel %vm61, 1, 0
    %v78 = vsel %vm62, 1, 0
    %v79 = vsel %vm63, 1, 0
    %v80 = vsel %vm64, 1, 0
    %v81 = vsel %vm65, 1, 0
    %v82 = vsel %vm66, 1, 0
    %v83 = vsel %vm67, 1, 0
    %v84 = vsel %vm68, 1, 0
    %v85 = vsel %vm69, 1, 0
    %v86 = vsel %vm70, 1, 0
    %v87 = vsel %vm71, 1, 0
    %v88 = vsel %vm72, 1, 0
    %v89 = vsel %vm73, 1, 0
    %v90 = vcvt.s32.f32 %v74
    %v91 = vcvt.s32.f32 %v75
    %v92 = vcvt.s32.f32 %v76
    %v93 = vcvt.s32.f32 %v77
    %v94 = vcvt.s32.f32 %v78
    %v95 = vcvt.s32.f32 %v79
    %v96 = vcvt.s32.f32 %v80
    %v97 = vcvt.s32.f32 %v81
    %v98 = vcvt.s32.f32 %v82
    %v99 = vcvt.s32.f32 %v83
    %v100 = vcvt.s32.f32 %v84
    %v101 = vcvt.s32.f32 %v85
    %v102 = vcvt.s32.f32 %v86
    %v103 = vcvt.s32.f32 %v87
    %v104 = vcvt.s32.f32 %v88
    %v105 = vcvt.s32.f32 %v89
    %106 = vmatprep.subr.mxu0 0.0
    %107 = vmatpush1.xpose.msra.mxu0 %v38
    %108 = vmatprep.subr.mxu0 0.0
    %109 = vmatpush1.xpose.msra.mxu0 0.0
    %110 = vmatprep.subr.mxu0 0.0
    %111 = vmatpush1.xpose.msra.mxu0 0.0
    %112 = vmatprep.subr.mxu0 0.0
    %113 = vmatpush1.xpose.msra.mxu0 0.0
    %114 = vmatprep.subr.mxu0 0.0
    %115 = vmatpush1.xpose.msra.mxu0 0.0
    %116 = vmatprep.subr.mxu0 0.0
    %117 = vmatpush1.xpose.msra.mxu0 0.0
    %118 = vmatprep.subr.mxu0 0.0
    %119 = vmatpush1.xpose.msra.mxu0 0.0
    %120 = vmatprep.subr.mxu0 0.0
    %121 = vmatpush1.xpose.msra.mxu0 0.0
    %122 = vmatprep.subr.mxu0 0.0
    %123 = vmatpush1.xpose.msra.mxu0 0.0
    %124 = vmatprep.subr.mxu0 0.0
    %125 = vmatpush1.xpose.msra.mxu0 0.0
    %126 = vmatprep.subr.mxu0 0.0
    %127 = vmatpush1.xpose.msra.mxu0 0.0
    %128 = vmatprep.subr.mxu0 0.0
    %129 = vmatpush1.xpose.msra.mxu0 0.0
    %130 = vmatprep.subr.mxu0 0.0
    %131 = vmatpush1.xpose.msra.mxu0 0.0
    %132 = vmatprep.subr.mxu0 0.0
    %133 = vmatpush1.xpose.msra.mxu0 0.0
    %134 = vmatprep.subr.mxu0 0.0
    %135 = vmatpush1.xpose.msra.mxu0 0.0
    %136 = vmatprep.subr.mxu0 0.0
    %137 = vmatpush1.xpose.msra.mxu0 0.0
    %138 = vmatprep.subr.mxu0 0.0
    %139 = vmatpush1.xpose.msra.mxu0 0.0
    %140 = vmatprep.subr.mxu0 0.0
    %141 = vmatpush1.xpose.msra.mxu0 0.0
    %142 = vmatprep.subr.mxu0 0.0
    %143 = vmatpush1.xpose.msra.mxu0 0.0
    %144 = vmatprep.subr.mxu0 0.0
    %145 = vmatpush1.xpose.msra.mxu0 0.0
    %146 = vmatprep.subr.mxu0 0.0
    %147 = vmatpush1.xpose.msra.mxu0 0.0
    %148 = vmatprep.subr.mxu0 0.0
    %149 = vmatpush1.xpose.msra.mxu0 0.0
    %150 = vmatprep.subr.mxu0 0.0
    %151 = vmatpush1.xpose.msra.mxu0 0.0
    %152 = vmatprep.subr.mxu0 0.0
    %153 = vmatpush1.xpose.msra.mxu0 0.0
    %154 = vmatprep.subr.mxu0 0.0
    %155 = vmatpush1.xpose.msra.mxu0 0.0
    %156 = vmatprep.subr.mxu0 0.0
    %157 = vmatpush1.xpose.msra.mxu0 0.0
    %158 = vmatprep.subr.mxu0 0.0
    %159 = vmatpush1.xpose.msra.mxu0 0.0
    %160 = vmatprep.subr.mxu0 0.0
    %161 = vmatpush1.xpose.msra.mxu0 0.0
    %162 = vmatprep.subr.mxu0 0.0
    %163 = vmatpush1.xpose.msra.mxu0 0.0
    %164 = vmatprep.subr.mxu0 0.0
    %165 = vmatpush1.xpose.msra.mxu0 0.0
    %166 = vmatprep.subr.mxu0 0.0
    %167 = vmatpush1.xpose.msra.mxu0 0.0
    %168 = vmatprep.subr.mxu0 0.0
    %169 = vmatpush1.xpose.msra.mxu0 0.0
    %170 = vmatprep.mubr.f32.mxu0 0.0
    %171 = vmatmul.mubr.f32.gmra.mrb[0].mxu0 %v90
    %v172 = vpop.f32.mrb[0].mxu0
    %v173 = vadd.f32 0.0, %v172
    %v174 = vpop.f32.mrb[0].mxu0
    %175 = vmatprep.mubr.f32.mxu0 0.0
    %176 = vmatmul.mubr.f32.gmra.mrb[0].mxu0 %v91
    %v177 = vpop.f32.mrb[0].mxu0
    %v178 = vadd.f32 0.0, %v177
    %v179 = vpop.f32.mrb[0].mxu0
    %180 = vmatprep.mubr.f32.mxu0 0.0
    %181 = vmatmul.mubr.f32.gmra.mrb[0].mxu0 %v92
    %v182 = vpop.f32.mrb[0].mxu0
    %v183 = vadd.f32 0.0, %v182
    %v184 = vpop.f32.mrb[0].mxu0
    %185 = vmatprep.mubr.f32.mxu0 0.0
    %186 = vmatmul.mubr.f32.gmra.mrb[0].mxu0 %v93
    %v187 = vpop.f32.mrb[0].mxu0
    %v188 = vadd.f32 0.0, %v187
    %v189 = vpop.f32.mrb[0].mxu0
    %190 = vmatprep.mubr.f32.mxu0 0.0
    %191 = vmatmul.mubr.f32.gmra.mrb[0].mxu0 %v94
    %v192 = vpop.f32.mrb[0].mxu0
    %v193 = vadd.f32 0.0, %v192
    %v194 = vpop.f32.mrb[0].mxu0
    %195 = vmatprep.mubr.f32.mxu0 0.0
    %196 = vmatmul.mubr.f32.gmra.mrb[0].mxu0 %v95
    %v197 = vpop.f32.mrb[0].mxu0
    %v198 = vadd.f32 0.0, %v197
    %v199 = vpop.f32.mrb[0].mxu0
    %200 = vmatprep.mubr.f32.mxu0 0.0
    %201 = vmatmul.mubr.f32.gmra.mrb[0].mxu0 %v96
    %v202 = vpop.f32.mrb[0].mxu0
    %v203 = vadd.f32 0.0, %v202
    %v204 = vpop.f32.mrb[0].mxu0
    %205 = vmatprep.mubr.f32.mxu0 0.0
    %206 = vmatmul.mubr.f32.gmra.mrb[0].mxu0 %v97
    %v207 = vpop.f32.mrb[0].mxu0
    %v208 = vadd.f32 0.0, %v207
    %v209 = vpop.f32.mrb[0].mxu0
    %210 = vmatprep.mubr.f32.mxu0 0.0
    %211 = vmatmul.mubr.f32.gmra.mrb[0].mxu0 %v98
    %v212 = vpop.f32.mrb[0].mxu0
    %v213 = vadd.f32 0.0, %v212
    %v214 = vpop.f32.mrb[0].mxu0
    %215 = vmatprep.mubr.f32.mxu0 0.0
    %216 = vmatmul.mubr.f32.gmra.mrb[0].mxu0 %v99
    %v217 = vpop.f32.mrb[0].mxu0
    %v218 = vadd.f32 0.0, %v217
    %v219 = vpop.f32.mrb[0].mxu0
    %220 = vmatprep.mubr.f32.mxu0 0.0
    %221 = vmatmul.mubr.f32.gmra.mrb[0].mxu0 %v100
    %v222 = vpop.f32.mrb[0].mxu0
    %v223 = vadd.f32 0.0, %v222
    %v224 = vpop.f32.mrb[0].mxu0
    %225 = vmatprep.mubr.f32.mxu0 0.0
    %226 = vmatmul.mubr.f32.gmra.mrb[0].mxu0 %v101
    %v227 = vpop.f32.mrb[0].mxu0
    %v228 = vadd.f32 0.0, %v227
    %v229 = vpop.f32.mrb[0].mxu0
    %230 = vmatprep.mubr.f32.mxu0 0.0
    %231 = vmatmul.mubr.f32.gmra.mrb[0].mxu0 %v102
    %v232 = vpop.f32.mrb[0].mxu0
    %v233 = vadd.f32 0.0, %v232
    %v234 = vpop.f32.mrb[0].mxu0
    %235 = vmatprep.mubr.f32.mxu0 0.0
    %236 = vmatmul.mubr.f32.gmra.mrb[0].mxu0 %v103
    %v237 = vpop.f32.mrb[0].mxu0
    %v238 = vadd.f32 0.0, %v237
    %v239 = vpop.f32.mrb[0].mxu0
    %240 = vmatprep.mubr.f32.mxu0 0.0
    %241 = vmatmul.mubr.f32.gmra.mrb[0].mxu0 %v104
    %v242 = vpop.f32.mrb[0].mxu0
    %v243 = vadd.f32 0.0, %v242
    %v244 = vpop.f32.mrb[0].mxu0
    %245 = vmatprep.mubr.f32.mxu0 0.0
    %246 = vmatmul.mubr.f32.gmra.mrb[0].mxu0 %v105
    %v247 = vpop.f32.mrb[0].mxu0
    %v248 = vadd.f32 0.0, %v247
    %v249 = vpop.f32.mrb[0].mxu0
    %250 = vdwg.mxu0
    %v251 = vmul.f32 %v173, %v173
    %v252 = vmul.f32 %v178, %v178
    %v253 = vmul.f32 %v183, %v183
    %v254 = vmul.f32 %v188, %v188
    %v255 = vmul.f32 %v193, %v193
    %v256 = vmul.f32 %v198, %v198
    %v257 = vmul.f32 %v203, %v203
    %v258 = vmul.f32 %v208, %v208
    %v259 = vmul.f32 %v213, %v213
    %v260 = vmul.f32 %v218, %v218
    %v261 = vmul.f32 %v223, %v223
    %v262 = vmul.f32 %v228, %v228
    %v263 = vmul.f32 %v233, %v233
    %v264 = vmul.f32 %v238, %v238
    %v265 = vmul.f32 %v243, %v243
    %v266 = vmul.f32 %v248, %v248
    %vm267 = vcmask 64512
    %v268 = vsel %vm267, %v251, 0.0
    %v269 = vsel %vm267, %v252, 0.0
    %v270 = vadd.f32 %v268, %v269
    %v271 = vsel %vm267, %v253, 0.0
    %v272 = vadd.f32 %v270, %v271
    %v273 = vsel %vm267, %v254, 0.0
    %v274 = vadd.f32 %v272, %v273
    %v275 = vsel %vm267, %v255, 0.0
    %v276 = vadd.f32 %v274, %v275
    %v277 = vsel %vm267, %v256, 0.0
    %v278 = vadd.f32 %v276, %v277
    %v279 = vsel %vm267, %v257, 0.0
    %v280 = vadd.f32 %v278, %v279
    %v281 = vsel %vm267, %v258, 0.0
    %v282 = vadd.f32 %v280, %v281
    %v283 = vsel %vm267, %v259, 0.0
    %v284 = vadd.f32 %v282, %v283
    %v285 = vsel %vm267, %v260, 0.0
    %v286 = vadd.f32 %v284, %v285
    %v287 = vsel %vm267, %v261, 0.0
    %v288 = vadd.f32 %v286, %v287
    %v289 = vsel %vm267, %v262, 0.0
    %v290 = vadd.f32 %v288, %v289
    %v291 = vsel %vm267, %v263, 0.0
    %v292 = vadd.f32 %v290, %v291
    %v293 = vsel %vm267, %v264, 0.0
    %v294 = vadd.f32 %v292, %v293
    %v295 = vsel %vm267, %v265, 0.0
    %v296 = vadd.f32 %v294, %v295
    %v297 = vsel %vm267, %v266, 0.0
    %v298 = vadd.f32 %v296, %v297
    %v299 = vrot.slane %v298, 4
    %v300 = vadd.f32 %v298, %v299
    %v301 = vrot.slane %v300, 2
    %v302 = vadd.f32 %v300, %v301
    %v303 = vrot.slane %v302, 1
    %v304 = vadd.f32 %v302, %v303
    %vm305 = vcmask 57344
    %306 = vst.msk [vmem:[#allocation7] sm:$0x1] %vm305, %v304
    // Predicated region
    $region18: #{tpu_custom_call.1} parent=1 // pred_check
      _
    $region19: #{tpu_custom_call.1} parent=1 // pred_check_branch
      %308 = sbr.rel (0) target = $region21
    $region20: #{tpu_custom_call.1} parent=1 // pred_region
      %s310 = ssub.s32 16, 16
      %311 = vsyncadd [#allocation4], %s310
      %s313 = sshll.u32 [#allocation7], 4
      %s314 = int_to_ptr.vmem [resolvable:$true] %s313
      %316 = dma.vmem_to_hbm [thread:$0]  %s314, 16, %s2, [#allocation4]
    $region21: #{tpu_custom_call.1} parent=1 // pred_fallthru
      _
    // Predicated region
    $region22: #{tpu_custom_call.1} parent=1 // pred_check
      _
    $region23: #{tpu_custom_call.1} parent=1 // pred_check_branch
      %318 = sbr.rel (0) target = $region25
    $region24: #{tpu_custom_call.1} parent=1 // pred_region
      %319 = dma.done [#allocation4], 16
    $region25: #{tpu_custom_call.1} parent=1 // pred_fallthru
      _
    %320 = vsyncpa [#allocation3], 1
    %321 = vsyncpa [#allocation6], 1
    %322 = vsyncpa [#allocation4], 1

</llo_original>
